<compile_context>
chip_gen: v6e
topology: v6e:2x2x1
jax: 0.10.0
libtpu: 0.0.40
codegen_flags: <defaults>
</compile_context>

<pallas_src>
import functools

import jax
import jax.numpy as jnp
from jax import lax
from jax.experimental import pallas as pl
from jax.experimental.pallas import tpu as pltpu


def _eff_attn_kernel(x_ref, mask_ref, wqkv_ref, bqkv_ref, gamma_ref, beta_ref,
                     out_ref, *, eps, num_heads, fuse_qkv):
    """One grid step == `block_b` batch elements; the whole (Bb, T, D) tile lives in VMEM."""
    Bb, T, D = x_ref.shape
    Dh = D // num_heads
    N = Bb * T

    x = x_ref[...]                                    # (Bb, T, D) f32
    m2 = mask_ref[...].reshape(N, 1)                  # (N, 1) 0/1 mask

    # ---- LayerNorm over D (f32) ----
    x2 = x.reshape(N, D)
    mu = jnp.mean(x2, axis=-1, keepdims=True)
    xc = x2 - mu
    var = jnp.mean(xc * xc, axis=-1, keepdims=True)
    ln = xc * lax.rsqrt(var + eps) * gamma_ref[...] + beta_ref[...]
    ln_bf = ln.astype(jnp.bfloat16)

    # ---- QKV projections (bf16 MXU operands, f32 accumulation) ----
    if fuse_qkv:
        # single (N, D) x (D, 3D) matmul; D % 128 == 0 so the splits are lane-aligned.
        qkv = jnp.dot(ln_bf, wqkv_ref[...],
                      preferred_element_type=jnp.float32) + bqkv_ref[...]
        q = qkv[:, :D]
        k = qkv[:, D:2 * D]
        v = qkv[:, 2 * D:]
    else:
        # stacked (3, D, D) weights; leading-axis ref indexing avoids unaligned lane slices.
        q = jnp.dot(ln_bf, wqkv_ref[0], preferred_element_type=jnp.float32) + bqkv_ref[0]
        k = jnp.dot(ln_bf, wqkv_ref[1], preferred_element_type=jnp.float32) + bqkv_ref[1]
        v = jnp.dot(ln_bf, wqkv_ref[2], preferred_element_type=jnp.float32) + bqkv_ref[2]

    # hoisted additive key mask / multiplicative value mask (f32)
    k = k + (1.0 - m2) * (-1000000.0)
    v = v * m2

    # ---- block-diagonal head mask, generated on-chip (no HBM input / DMA) ----
    row = lax.broadcasted_iota(jnp.int32, (D, D), 0).astype(jnp.float32)
    col = lax.broadcasted_iota(jnp.int32, (D, D), 1).astype(jnp.float32)
    inv_dh = 1.0 / float(Dh)
    same_head = jnp.floor((row + 0.5) * inv_dh) == jnp.floor((col + 0.5) * inv_dh)
    hmask_f = same_head.astype(jnp.float32)           # (D, D)
    hmask_bf = same_head.astype(jnp.bfloat16)

    # ---- Q softmax over each head's Dh slice ----
    # Subtracting the full-row max is exact (it is constant inside every head block and
    # cancels); per-head denominators come from one bf16 matmul with the head mask.
    q = jnp.exp(q - jnp.max(q, axis=-1, keepdims=True))
    qden = jnp.dot(q.astype(jnp.bfloat16), hmask_bf,
                   preferred_element_type=jnp.float32)
    qden = jnp.maximum(qden, 1e-20)                    # guard approx-reciprocal vs underflow
    q = q * pl.reciprocal(qden, approx=True)

    # ---- K softmax over the sequence axis, vectorized over the batch (f32) ----
    k3 = k.reshape(Bb, T, D)
    ke = jnp.exp(k3 - jnp.max(k3, axis=1, keepdims=True))
    k_sm = ke * pl.reciprocal(jnp.sum(ke, axis=1, keepdims=True), approx=True)

    # ---- attention: all heads & batch elements at once, batched bf16 MXU matmuls ----
    q_bf = q.reshape(Bb, T, D).astype(jnp.bfloat16)
    k_bf = k_sm.astype(jnp.bfloat16)
    v_bf = v.reshape(Bb, T, D).astype(jnp.bfloat16)

    attn = jnp.einsum('btd,bte->bde', k_bf, v_bf,
                      preferred_element_type=jnp.float32)        # (Bb, D, D)
    attn = (attn * hmask_f).astype(jnp.bfloat16)                 # keep per-head blocks
    y = jnp.einsum('btd,bde->bte', q_bf, attn,
                   preferred_element_type=jnp.float32)           # (Bb, T, D)

    out_ref[...] = (x + y).astype(out_ref.dtype)                 # pre-LN residual (f32)


def _vmem_capacity_bytes():
    try:
        return int(getattr(pltpu.get_tpu_info(), "vmem_capacity_bytes"))
    except Exception:
        return 64 * 1024 * 1024       # conservative default (v7x per-TensorCore)


def _plan_blocks(B, T, D):
    """Generation-aware (block_b, num_grid_blocks, vmem_limit_bytes)."""
    vmem = _vmem_capacity_bytes()
    two_cores = vmem <= 64 * 1024 * 1024      # v7x heuristic: 64 MiB/TC, 2 TCs/chip
    f32, bf16 = 4, 2

    # Resident bytes: (possibly double-buffered) bf16 fused weight + biases/LN params,
    # the on-chip head-mask iota planes, plus slack.
    fixed = 2 * (3 * D * D * bf16 + 3 * D * f32 + 2 * D * f32) + 12 * D * D + (1 << 20)
    # Per batch element: double-buffered x/out tiles, lane-padded mask tile, ~14 live
    # f32 (T, D)-class intermediates and the (D, D) attention matrix (f32 + bf16).
    per_b = 4 * T * D * f32 + 2 * T * 128 * f32 + 14 * T * D * f32 + 6 * D * D

    budget = int(vmem * 0.70) - fixed
    block_b = max(1, min(B, budget // per_b))
    nblk = -(-B // block_b)
    if two_cores and B >= 2:
        # even number of grid blocks so both v7x TensorCores stay busy
        if nblk < 2:
            nblk = 2
        elif nblk % 2:
            nblk += 1
        block_b = -(-B // nblk)
    est = fixed + per_b * block_b
    vmem_limit = int(min(vmem - (2 << 20), max(est + (8 << 20), 32 << 20)))
    return block_b, nblk, vmem_limit


def efficient_self_attention(x, src_mask, params, *, num_heads, eps=1e-5, block_b=None):
    """x: (B, T, D) f32, src_mask: (B, T, 1) f32 of 0/1."""
    B, T, D = x.shape
    assert D % num_heads == 0
    wq, bq, wk, bk, wv, bv, gamma, beta = params

    planned_bb, nblk, vmem_limit = _plan_blocks(B, T, D)
    if block_b is None:
        block_b = planned_bb
    nblk = -(-B // block_b)
    B_pad = nblk * block_b

    # Pad odd / non-divisible batches instead of collapsing to block_b = 1.
    if B_pad != B:
        pad = B_pad - B
        x_in = jnp.pad(x, ((0, pad), (0, 0), (0, 0)))
        m_in = jnp.pad(src_mask, ((0, pad), (0, 0), (0, 0)))
    else:
        x_in, m_in = x, src_mask

    fuse_qkv = (D % 128 == 0)
    if fuse_qkv:
        wqkv = jnp.concatenate([wq, wk, wv], axis=1).astype(jnp.bfloat16)   # (D, 3D)
        bqkv = jnp.concatenate([bq, bk, bv], axis=1).astype(jnp.float32)    # (1, 3D)
        w_spec = pl.BlockSpec((D, 3 * D), lambda b: (0, 0))
        b_spec = pl.BlockSpec((1, 3 * D), lambda b: (0, 0))
    else:
        wqkv = jnp.stack([wq, wk, wv], axis=0).astype(jnp.bfloat16)         # (3, D, D)
        bqkv = jnp.stack([bq, bk, bv], axis=0).astype(jnp.float32)          # (3, 1, D)
        w_spec = pl.BlockSpec((3, D, D), lambda b: (0, 0, 0))
        b_spec = pl.BlockSpec((3, 1, D), lambda b: (0, 0, 0))

    kernel = functools.partial(_eff_attn_kernel, eps=eps, num_heads=num_heads,
                               fuse_qkv=fuse_qkv)

    out = pl.pallas_call(
        kernel,
        out_shape=jax.ShapeDtypeStruct((B_pad, T, D), x.dtype),
        grid=(nblk,),
        in_specs=[
            pl.BlockSpec((block_b, T, D), lambda b: (b, 0, 0)),   # x
            pl.BlockSpec((block_b, T, 1), lambda b: (b, 0, 0)),   # src_mask
            w_spec,                                               # fused/stacked QKV weight (bf16)
            b_spec,                                               # fused/stacked QKV bias (f32)
            pl.BlockSpec((1, D), lambda b: (0, 0)),               # LayerNorm gamma
            pl.BlockSpec((1, D), lambda b: (0, 0)),               # LayerNorm beta
        ],
        out_specs=pl.BlockSpec((block_b, T, D), lambda b: (b, 0, 0)),
        compiler_params=pltpu.CompilerParams(
            dimension_semantics=("parallel",),
            vmem_limit_bytes=vmem_limit),
    )(x_in, m_in, wqkv, bqkv, gamma, beta)

    return out[:B] if B_pad != B else out


def _reference(x, src_mask, params, *, num_heads, eps=1e-5):
    """Pure-JAX replica of the PyTorch forward (time_embed_dim=None)."""
    wq, bq, wk, bk, wv, bv, gamma, beta = params
    B, T, D = x.shape
    H = num_heads
    mu = jnp.mean(x, axis=-1, keepdims=True)
    var = jnp.mean((x - mu) ** 2, axis=-1, keepdims=True)
    ln = (x - mu) / jnp.sqrt(var + eps) * gamma + beta
    q = ln @ wq + bq
    k = ln @ wk + bk + (1.0 - src_mask) * (-1000000.0)
    v = (ln @ wv + bv) * src_mask
    q = jax.nn.softmax(q.reshape(B, T, H, -1), axis=-1)
    k = jax.nn.softmax(k.reshape(B, T, H, -1), axis=1)
    v = v.reshape(B, T, H, -1)
    attn = jnp.einsum('bnhd,bnhl->bhdl', k, v)
    y = jnp.einsum('bnhd,bhdl->bnhl', q, attn).reshape(B, T, D)
    return x + y


if __name__ == "__main__":
    # Small shapes consistent with the module: B=2, T=8, D=32, H=4 (head_dim=8).
    B, T, D, H = 2, 8, 32, 4
    key = jax.random.PRNGKey(0)
    ks = jax.random.split(key, 12)

    x = jax.random.normal(ks[0], (B, T, D), jnp.float32)
    src_mask = (jax.random.uniform(ks[1], (B, T, 1)) > 0.25).astype(jnp.float32)

    # Deterministic synthetic parameters (PyTorch Linear/LayerNorm shapes, W pre-transposed
    # so the projection is ln @ W + b).
    scale = 0.05
    wq = scale * jax.random.normal(ks[2], (D, D), jnp.float32)
    bq = scale * jax.random.normal(ks[3], (1, D), jnp.float32)
    wk = scale * jax.random.normal(ks[4], (D, D), jnp.float32)
    bk = scale * jax.random.normal(ks[5], (1, D), jnp.float32)
    wv = scale * jax.random.normal(ks[6], (D, D), jnp.float32)
    bv = scale * jax.random.normal(ks[7], (1, D), jnp.float32)
    gamma = jnp.ones((1, D), jnp.float32) + 0.1 * jax.random.normal(ks[8], (1, D), jnp.float32)
    beta = 0.1 * jax.random.normal(ks[9], (1, D), jnp.float32)
    params = (wq, bq, wk, bk, wv, bv, gamma, beta)

    out = efficient_self_attention(x, src_mask, params, num_heads=H)
    out = jax.block_until_ready(out)

    ref = _reference(x, src_mask, params, num_heads=H)
    assert out.shape == (B, T, D) and out.dtype == jnp.float32
    assert not bool(jnp.any(jnp.isnan(out))), "NaN in kernel output"
    # Tolerance relaxed vs. the exact-f32 reference because matmul operands are bf16
    # (f32 accumulation) and the softmax divides use the EUP approximate reciprocal.
    assert jnp.allclose(out, ref, atol=2e-2, rtol=2e-2), "mismatch vs reference"
    print("KERNEL_OK")
</pallas_src>

<mosaic_0001>
module attributes {stable_mosaic.version = 11 : i64} {
  func.func @_eff_attn_kernel(%arg0: i32, %arg1: memref<1x8x32xf32, #tpu.memory_space<vmem>>, %arg2: memref<1x8x1xf32, #tpu.memory_space<vmem>>, %arg3: memref<3x32x32xbf16, #tpu.memory_space<vmem>>, %arg4: memref<3x1x32xf32, #tpu.memory_space<vmem>>, %arg5: memref<1x32xf32, #tpu.memory_space<vmem>>, %arg6: memref<1x32xf32, #tpu.memory_space<vmem>>, %arg7: memref<1x8x32xf32, #tpu.memory_space<vmem>>) attributes {dimension_semantics = [#tpu.dimension_semantics<parallel>], iteration_bounds = array<i64: 2>, scalar_prefetch = 0 : i64, scratch_operands = 0 : i64, tpu.core_type = #tpu.core_type<tc>, window_params = [{transform_indices = @transform_0, window_bounds = array<i64: 1, 8, 32>}, {transform_indices = @transform_1, window_bounds = array<i64: 1, 8, 1>}, {pipeline_mode = #tpu.pipeline_mode<synchronous>, transform_indices = @transform_2, window_bounds = array<i64: 3, 32, 32>}, {pipeline_mode = #tpu.pipeline_mode<synchronous>, transform_indices = @transform_3, window_bounds = array<i64: 3, 1, 32>}, {pipeline_mode = #tpu.pipeline_mode<synchronous>, transform_indices = @transform_4, window_bounds = array<i64: 1, 32>}, {pipeline_mode = #tpu.pipeline_mode<synchronous>, transform_indices = @transform_5, window_bounds = array<i64: 1, 32>}, {transform_indices = @transform_6, window_bounds = array<i64: 1, 8, 32>}]} {
    %c0 = arith.constant 0 : index
    %c0_0 = arith.constant 0 : index
    %c0_1 = arith.constant 0 : index
    %0 = vector.load %arg1[%c0, %c0_0, %c0_1] : memref<1x8x32xf32, #tpu.memory_space<vmem>>, vector<1x8x32xf32>
    %c0_2 = arith.constant 0 : index
    %c0_3 = arith.constant 0 : index
    %c0_4 = arith.constant 0 : index
    %1 = vector.load %arg2[%c0_2, %c0_3, %c0_4] : memref<1x8x1xf32, #tpu.memory_space<vmem>>, vector<1x8x1xf32>
    %2 = vector.shape_cast %1 : vector<1x8x1xf32> to vector<8x1xf32>
    %3 = vector.shape_cast %0 : vector<1x8x32xf32> to vector<8x32xf32>
    %cst = arith.constant dense<0.000000e+00> : vector<8xf32>
    %4 = vector.multi_reduction <add>, %3, %cst [1] : vector<8x32xf32> to vector<8xf32>
    %5 = vector.shape_cast %4 : vector<8xf32> to vector<8x1xf32>
    %cst_5 = arith.constant 3.200000e+01 : f32
    %6 = vector.broadcast %cst_5 : f32 to vector<8x1xf32>
    %7 = arith.divf %5, %6 : vector<8x1xf32>
    %8 = vector.broadcast %7 : vector<8x1xf32> to vector<8x32xf32>
    %9 = arith.subf %3, %8 : vector<8x32xf32>
    %10 = arith.mulf %9, %9 : vector<8x32xf32>
    %cst_6 = arith.constant dense<0.000000e+00> : vector<8xf32>
    %11 = vector.multi_reduction <add>, %10, %cst_6 [1] : vector<8x32xf32> to vector<8xf32>
    %12 = vector.shape_cast %11 : vector<8xf32> to vector<8x1xf32>
    %cst_7 = arith.constant 3.200000e+01 : f32
    %13 = vector.broadcast %cst_7 : f32 to vector<8x1xf32>
    %14 = arith.divf %12, %13 : vector<8x1xf32>
    %cst_8 = arith.constant 9.99999974E-6 : f32
    %15 = vector.broadcast %cst_8 : f32 to vector<8x1xf32>
    %16 = arith.addf %14, %15 : vector<8x1xf32>
    %17 = math.rsqrt %16 : vector<8x1xf32>
    %18 = vector.broadcast %17 : vector<8x1xf32> to vector<8x32xf32>
    %19 = arith.mulf %9, %18 : vector<8x32xf32>
    %c0_9 = arith.constant 0 : index
    %c0_10 = arith.constant 0 : index
    %20 = vector.load %arg5[%c0_9, %c0_10] : memref<1x32xf32, #tpu.memory_space<vmem>>, vector<1x32xf32>
    %21 = vector.broadcast %20 : vector<1x32xf32> to vector<8x32xf32>
    %22 = arith.mulf %19, %21 : vector<8x32xf32>
    %c0_11 = arith.constant 0 : index
    %c0_12 = arith.constant 0 : index
    %23 = vector.load %arg6[%c0_11, %c0_12] : memref<1x32xf32, #tpu.memory_space<vmem>>, vector<1x32xf32>
    %24 = vector.broadcast %23 : vector<1x32xf32> to vector<8x32xf32>
    %25 = arith.addf %22, %24 : vector<8x32xf32>
    %26 = arith.truncf %25 : vector<8x32xf32> to vector<8x32xbf16>
    %c0_13 = arith.constant 0 : index
    %c0_14 = arith.constant 0 : index
    %c0_15 = arith.constant 0 : index
    %27 = vector.load %arg3[%c0_13, %c0_14, %c0_15] : memref<3x32x32xbf16, #tpu.memory_space<vmem>>, vector<1x32x32xbf16>
    %28 = vector.shape_cast %27 : vector<1x32x32xbf16> to vector<32x32xbf16>
    %cst_16 = arith.constant dense<0.000000e+00> : vector<8x32xf32>
    %29 = tpu.matmul %26, %28, %cst_16 {dimension_numbers = #tpu.dot_dimension_numbers<[1], [0], [0], [1], [0, 0, 1, 1], [], []>} : vector<8x32xbf16>, vector<32x32xbf16>, vector<8x32xf32> -> vector<8x32xf32>
    %c0_17 = arith.constant 0 : index
    %c0_18 = arith.constant 0 : index
    %c0_19 = arith.constant 0 : index
    %30 = vector.load %arg4[%c0_17, %c0_18, %c0_19] : memref<3x1x32xf32, #tpu.memory_space<vmem>>, vector<1x1x32xf32>
    %31 = vector.shape_cast %30 : vector<1x1x32xf32> to vector<1x32xf32>
    %32 = vector.broadcast %31 : vector<1x32xf32> to vector<8x32xf32>
    %33 = arith.addf %29, %32 : vector<8x32xf32>
    %c1 = arith.constant 1 : index
    %c0_20 = arith.constant 0 : index
    %c0_21 = arith.constant 0 : index
    %34 = vector.load %arg3[%c1, %c0_20, %c0_21] : memref<3x32x32xbf16, #tpu.memory_space<vmem>>, vector<1x32x32xbf16>
    %35 = vector.shape_cast %34 : vector<1x32x32xbf16> to vector<32x32xbf16>
    %cst_22 = arith.constant dense<0.000000e+00> : vector<8x32xf32>
    %36 = tpu.matmul %26, %35, %cst_22 {dimension_numbers = #tpu.dot_dimension_numbers<[1], [0], [0], [1], [0, 0, 1, 1], [], []>} : vector<8x32xbf16>, vector<32x32xbf16>, vector<8x32xf32> -> vector<8x32xf32>
    %c1_23 = arith.constant 1 : index
    %c0_24 = arith.constant 0 : index
    %c0_25 = arith.constant 0 : index
    %37 = vector.load %arg4[%c1_23, %c0_24, %c0_25] : memref<3x1x32xf32, #tpu.memory_space<vmem>>, vector<1x1x32xf32>
    %38 = vector.shape_cast %37 : vector<1x1x32xf32> to vector<1x32xf32>
    %39 = vector.broadcast %38 : vector<1x32xf32> to vector<8x32xf32>
    %40 = arith.addf %36, %39 : vector<8x32xf32>
    %c2 = arith.constant 2 : index
    %c0_26 = arith.constant 0 : index
    %c0_27 = arith.constant 0 : index
    %41 = vector.load %arg3[%c2, %c0_26, %c0_27] : memref<3x32x32xbf16, #tpu.memory_space<vmem>>, vector<1x32x32xbf16>
    %42 = vector.shape_cast %41 : vector<1x32x32xbf16> to vector<32x32xbf16>
    %cst_28 = arith.constant dense<0.000000e+00> : vector<8x32xf32>
    %43 = tpu.matmul %26, %42, %cst_28 {dimension_numbers = #tpu.dot_dimension_numbers<[1], [0], [0], [1], [0, 0, 1, 1], [], []>} : vector<8x32xbf16>, vector<32x32xbf16>, vector<8x32xf32> -> vector<8x32xf32>
    %c2_29 = arith.constant 2 : index
    %c0_30 = arith.constant 0 : index
    %c0_31 = arith.constant 0 : index
    %44 = vector.load %arg4[%c2_29, %c0_30, %c0_31] : memref<3x1x32xf32, #tpu.memory_space<vmem>>, vector<1x1x32xf32>
    %45 = vector.shape_cast %44 : vector<1x1x32xf32> to vector<1x32xf32>
    %46 = vector.broadcast %45 : vector<1x32xf32> to vector<8x32xf32>
    %47 = arith.addf %43, %46 : vector<8x32xf32>
    %cst_32 = arith.constant 1.000000e+00 : f32
    %48 = vector.broadcast %cst_32 : f32 to vector<8x1xf32>
    %49 = arith.subf %48, %2 : vector<8x1xf32>
    %cst_33 = arith.constant -1.000000e+06 : f32
    %50 = vector.broadcast %cst_33 : f32 to vector<8x1xf32>
    %51 = arith.mulf %49, %50 : vector<8x1xf32>
    %52 = vector.broadcast %51 : vector<8x1xf32> to vector<8x32xf32>
    %53 = arith.addf %40, %52 : vector<8x32xf32>
    %54 = vector.broadcast %2 : vector<8x1xf32> to vector<8x32xf32>
    %55 = arith.mulf %47, %54 : vector<8x32xf32>
    %56 = tpu.iota {dimensions = array<i32: 0>} : vector<32x32xi32>
    %57 = arith.sitofp %56 : vector<32x32xi32> to vector<32x32xf32>
    %58 = tpu.iota {dimensions = array<i32: 1>} : vector<32x32xi32>
    %59 = arith.sitofp %58 : vector<32x32xi32> to vector<32x32xf32>
    %cst_34 = arith.constant 5.000000e-01 : f32
    %60 = vector.broadcast %cst_34 : f32 to vector<32x32xf32>
    %61 = arith.addf %57, %60 : vector<32x32xf32>
    %cst_35 = arith.constant 1.250000e-01 : f32
    %62 = vector.broadcast %cst_35 : f32 to vector<32x32xf32>
    %63 = arith.mulf %61, %62 : vector<32x32xf32>
    %64 = math.floor %63 : vector<32x32xf32>
    %cst_36 = arith.constant 5.000000e-01 : f32
    %65 = vector.broadcast %cst_36 : f32 to vector<32x32xf32>
    %66 = arith.addf %59, %65 : vector<32x32xf32>
    %cst_37 = arith.constant 1.250000e-01 : f32
    %67 = vector.broadcast %cst_37 : f32 to vector<32x32xf32>
    %68 = arith.mulf %66, %67 : vector<32x32xf32>
    %69 = math.floor %68 : vector<32x32xf32>
    %70 = arith.cmpf oeq, %64, %69 : vector<32x32xf32>
    %71 = arith.extui %70 : vector<32x32xi1> to vector<32x32xi32>
    %72 = arith.sitofp %71 : vector<32x32xi32> to vector<32x32xf32>
    %73 = arith.extui %70 : vector<32x32xi1> to vector<32x32xi32>
    %74 = arith.sitofp %73 : vector<32x32xi32> to vector<32x32xf32>
    %75 = arith.truncf %74 : vector<32x32xf32> to vector<32x32xbf16>
    %cst_38 = arith.constant dense<0xFF800000> : vector<8xf32>
    %76 = vector.multi_reduction <maximumf>, %33, %cst_38 [1] : vector<8x32xf32> to vector<8xf32>
    %77 = vector.shape_cast %76 : vector<8xf32> to vector<8x1xf32>
    %78 = vector.broadcast %77 : vector<8x1xf32> to vector<8x32xf32>
    %79 = arith.subf %33, %78 : vector<8x32xf32>
    %80 = math.exp %79 : vector<8x32xf32>
    %81 = arith.truncf %80 : vector<8x32xf32> to vector<8x32xbf16>
    %cst_39 = arith.constant dense<0.000000e+00> : vector<8x32xf32>
    %82 = tpu.matmul %81, %75, %cst_39 {dimension_numbers = #tpu.dot_dimension_numbers<[1], [0], [0], [1], [0, 0, 1, 1], [], []>} : vector<8x32xbf16>, vector<32x32xbf16>, vector<8x32xf32> -> vector<8x32xf32>
    %cst_40 = arith.constant 9.99999968E-21 : f32
    %83 = vector.broadcast %cst_40 : f32 to vector<8x32xf32>
    %84 = arith.maximumf %82, %83 : vector<8x32xf32>
    %85 = tpu.reciprocal %84 {approx = true} : vector<8x32xf32> -> vector<8x32xf32>
    %86 = arith.mulf %80, %85 : vector<8x32xf32>
    %87 = vector.shape_cast %53 : vector<8x32xf32> to vector<1x8x32xf32>
    %cst_41 = arith.constant dense<0xFF800000> : vector<1x32xf32>
    %88 = vector.multi_reduction <maximumf>, %87, %cst_41 [1] : vector<1x8x32xf32> to vector<1x32xf32>
    %89 = vector.shape_cast %88 : vector<1x32xf32> to vector<1x1x32xf32>
    %90 = vector.broadcast %89 : vector<1x1x32xf32> to vector<1x8x32xf32>
    %91 = arith.subf %87, %90 : vector<1x8x32xf32>
    %92 = math.exp %91 : vector<1x8x32xf32>
    %cst_42 = arith.constant dense<0.000000e+00> : vector<1x32xf32>
    %93 = vector.multi_reduction <add>, %92, %cst_42 [1] : vector<1x8x32xf32> to vector<1x32xf32>
    %94 = vector.shape_cast %93 : vector<1x32xf32> to vector<1x1x32xf32>
    %95 = tpu.reciprocal %94 {approx = true} : vector<1x1x32xf32> -> vector<1x1x32xf32>
    %96 = vector.broadcast %95 : vector<1x1x32xf32> to vector<1x8x32xf32>
    %97 = arith.mulf %92, %96 : vector<1x8x32xf32>
    %98 = vector.shape_cast %86 : vector<8x32xf32> to vector<1x8x32xf32>
    %99 = arith.truncf %98 : vector<1x8x32xf32> to vector<1x8x32xbf16>
    %100 = arith.truncf %97 : vector<1x8x32xf32> to vector<1x8x32xbf16>
    %101 = vector.shape_cast %55 : vector<8x32xf32> to vector<1x8x32xf32>
    %102 = arith.truncf %101 : vector<1x8x32xf32> to vector<1x8x32xbf16>
    "tpu.trace_start"() <{level = 10 : i32, message = "btd,bte->bde"}> : () -> ()
    %cst_43 = arith.constant dense<0.000000e+00> : vector<1x32x32xf32>
    %103 = tpu.matmul %100, %102, %cst_43 {dimension_numbers = #tpu.dot_dimension_numbers<[1], [1], [2], [2], [0, 0, 0, 2, 1, 2], [0], [0]>} : vector<1x8x32xbf16>, vector<1x8x32xbf16>, vector<1x32x32xf32> -> vector<1x32x32xf32>
    "tpu.trace_stop"() : () -> ()
    %104 = vector.shape_cast %72 : vector<32x32xf32> to vector<1x32x32xf32>
    %105 = arith.mulf %103, %104 : vector<1x32x32xf32>
    %106 = arith.truncf %105 : vector<1x32x32xf32> to vector<1x32x32xbf16>
    "tpu.trace_start"() <{level = 10 : i32, message = "btd,bde->bte"}> : () -> ()
    %cst_44 = arith.constant dense<0.000000e+00> : vector<1x8x32xf32>
    %107 = tpu.matmul %99, %106, %cst_44 {dimension_numbers = #tpu.dot_dimension_numbers<[2], [1], [1], [2], [0, 0, 0, 1, 1, 2], [0], [0]>} : vector<1x8x32xbf16>, vector<1x32x32xbf16>, vector<1x8x32xf32> -> vector<1x8x32xf32>
    "tpu.trace_stop"() : () -> ()
    %108 = arith.addf %0, %107 : vector<1x8x32xf32>
    %c0_45 = arith.constant 0 : index
    %c0_46 = arith.constant 0 : index
    %c0_47 = arith.constant 0 : index
    %109 = vector.load %arg7[%c0_45, %c0_46, %c0_47] : memref<1x8x32xf32, #tpu.memory_space<vmem>>, vector<1x8x32xf32>
    tpu.vector_store %arg7[%c0_45, %c0_46, %c0_47], %108 {strides = array<i32>} : memref<1x8x32xf32, #tpu.memory_space<vmem>>, vector<1x8x32xf32>,
    return
  }
  func.func @transform_0(%arg0: i32) -> (i32, i32, i32) {
    %c0_i32 = arith.constant 0 : i32
    %c0_i32_0 = arith.constant 0 : i32
    %c0_i32_1 = arith.constant 0 : i32
    return %arg0, %c0_i32, %c0_i32_0 : i32, i32, i32
  }
  func.func @transform_1(%arg0: i32) -> (i32, i32, i32) {
    %c0_i32 = arith.constant 0 : i32
    %c0_i32_0 = arith.constant 0 : i32
    %c0_i32_1 = arith.constant 0 : i32
    return %arg0, %c0_i32, %c0_i32_0 : i32, i32, i32
  }
  func.func @transform_2(%arg0: i32) -> (i32, i32, i32) {
    %c0_i32 = arith.constant 0 : i32
    %c0_i32_0 = arith.constant 0 : i32
    %c0_i32_1 = arith.constant 0 : i32
    %c0_i32_2 = arith.constant 0 : i32
    return %c0_i32, %c0_i32_0, %c0_i32_1 : i32, i32, i32
  }
  func.func @transform_3(%arg0: i32) -> (i32, i32, i32) {
    %c0_i32 = arith.constant 0 : i32
    %c0_i32_0 = arith.constant 0 : i32
    %c0_i32_1 = arith.constant 0 : i32
    %c0_i32_2 = arith.constant 0 : i32
    return %c0_i32, %c0_i32_0, %c0_i32_1 : i32, i32, i32
  }
  func.func @transform_4(%arg0: i32) -> (i32, i32) {
    %c0_i32 = arith.constant 0 : i32
    %c0_i32_0 = arith.constant 0 : i32
    %c0_i32_1 = arith.constant 0 : i32
    return %c0_i32, %c0_i32_0 : i32, i32
  }
  func.func @transform_5(%arg0: i32) -> (i32, i32) {
    %c0_i32 = arith.constant 0 : i32
    %c0_i32_0 = arith.constant 0 : i32
    %c0_i32_1 = arith.constant 0 : i32
    return %c0_i32, %c0_i32_0 : i32, i32
  }
  func.func @transform_6(%arg0: i32) -> (i32, i32, i32) {
    %c0_i32 = arith.constant 0 : i32
    %c0_i32_0 = arith.constant 0 : i32
    %c0_i32_1 = arith.constant 0 : i32
    return %arg0, %c0_i32, %c0_i32_0 : i32, i32, i32
  }
}

</mosaic_0001>

<llo_original>
// kernel: tpu_custom_call.1
$region0: #{tpu_custom_call.1}
  #allocation0 [shape = 'u32[]', space=smem, size = 0x4, offset = 0x4, fixed_abs, tag = 'smem constant byte address 0x4 - core index']
  #allocation1 [shape = 'u32[144,128]{1,0:T(1,128)}', space=vmem, size = 0x12000, scoped, tag = 'internal scratch']
  %s0 = inlined_call_operand.vmem [shape: f32[2,8,32], index: 0, kind: input, shape index: {}]
  %s1 = inlined_call_operand.vmem [shape: f32[2,8,1], index: 1, kind: input, shape index: {}]
  %s2 = inlined_call_operand.hbm [shape: bf16[3,32,32], index: 2, kind: input, shape index: {}]
  %s3 = inlined_call_operand.vmem [shape: f32[3,1,32], index: 3, kind: input, shape index: {}]
  %s4 = inlined_call_operand.vmem [shape: f32[1,32], index: 4, kind: input, shape index: {}]
  %s5 = inlined_call_operand.vmem [shape: f32[1,32], index: 5, kind: input, shape index: {}]
  %s6 = inlined_call_operand.hbm [shape: f32[2,8,32], index: 6, kind: output, shape index: {}]
  %s7 = sld [smem:[#allocation0]]
  $region61: #{tpu_custom_call.1} parent=0
    _
  %s9 = ssub.s32 1, %s7
  %s10 = scalar_select 0, %s9, %s7
  $region1: #{tpu_custom_call.1} parent=0
    #allocation2 [shape = 'u8[24576]{0}', space=vmem, size = 0x6000, scoped, tag = 'input window, operand 2, single buffered']
    #allocation3 [shape = 's32[2]{0}', space=sflag, size = 0x8, scoped, tag = 'scoped memory for tpu_custom_call.1']
    #allocation4 [shape = 's32[2]{0}', space=sflag, size = 0x8, scoped, tag = 'scoped memory for tpu_custom_call.1']
    #allocation5 [shape = 'u8[8192]{0}', space=vmem, size = 0x2000, scoped, tag = 'output window, operand 0']
    %11 = vsyncpa [#allocation3], 0
    %12 = vsyncpa [#allocation4], 0
    %s13 = scalar_lea.sflag [#allocation4], 1
    %14 = vsyncpa %s13, 0
    loop: start=0, step=1, limit=4
    $region2: #{tpu_custom_call.1} parent=1 // loop_pre_header
      _
    $region3: #{tpu_custom_call.1} parent=1 // loop_header
      %s16 = sphi 0, %s20
      %p17 = scmp.ge.s32.totalorder %s16, 4
      %s26 = sphi 0, %s28
      %s29 = sphi 0, %s26
      %s30 = sphi 0, %s29
      %s46 = sphi 0, %s30
      %s52 = sphi 0, %s54
      %s55 = sphi 0, %s52
      %s56 = sphi 0, %s55
      %s72 = sphi 0, %s56
      %s76 = sphi 0, %s76
      %s78 = sphi 0, %s76
      %s79 = sphi 0, %s78
      %s93 = sphi 0, %s79
      %s97 = sphi 0, %s97
      %s99 = sphi 0, %s97
      %s100 = sphi 0, %s99
      %s114 = sphi 0, %s100
      %s118 = sphi 0, %s118
      %s120 = sphi 0, %s118
      %s121 = sphi 0, %s120
      %s135 = sphi 0, %s121
      %s139 = sphi 0, %s139
      %s141 = sphi 0, %s139
      %s142 = sphi 0, %s141
      %s156 = sphi 0, %s142
      %s162 = sphi 0, %s164
      %s165 = sphi 0, %s162
      %s166 = sphi 0, %s165
      %s182 = sphi 0, %s166
    $region4: #{tpu_custom_call.1} parent=1 // loop_header_branch
      %19 = sbr.rel (%p17) target = $region8
    $region5: #{tpu_custom_call.1} parent=1 // loop_body
      %s21 = ssub.s32 %s16, 1
      %s22 = ssub.s32 %s16, 2
      %s23 = sadd.s32 %s16, 1
      %s24 = ssub.s32 %s16, %s23
      %p25 = scmp.eq.s32.totalorder %s24, 0
      %s27 = sadd.s32 %s26, 1
      %s28 = scalar_select %p25, %s26, %s27
      %p31 = pneg %p25
      %p32 = scmp.eq.s32.totalorder %s16, 1
      %p33 = por %p31, %p32
      %p34 = scmp.ne.s32.totalorder %s26, %s29
      %p35 = scmp.eq.s32.totalorder %s16, 0
      %p36 = por %p34, %p35
      %p37 = scmp.ne.s32.totalorder %s26, %s29
      %p38 = scmp.eq.s32.totalorder %s21, 1
      %p39 = por %p37, %p38
      %p40 = scmp.ne.s32.totalorder %s29, %s30
      %p41 = scmp.eq.s32.totalorder %s21, 0
      %p42 = por %p40, %p41
      %p43 = scmp.ne.s32.totalorder %s29, %s30
      %p44 = scmp.eq.s32.totalorder %s22, 1
      %p45 = por %p43, %p44
      %p47 = scmp.ne.s32.totalorder %s30, %s46
      %p48 = scmp.eq.s32.totalorder %s22, 0
      %p49 = por %p47, %p48
      %s50 = ssub.s32 %s16, %s23
      %p51 = scmp.eq.s32.totalorder %s50, 0
      %s53 = sadd.s32 %s52, 1
      %s54 = scalar_select %p51, %s52, %s53
      %p57 = pneg %p51
      %p58 = scmp.eq.s32.totalorder %s16, 1
      %p59 = por %p57, %p58
      %p60 = scmp.ne.s32.totalorder %s52, %s55
      %p61 = scmp.eq.s32.totalorder %s16, 0
      %p62 = por %p60, %p61
      %p63 = scmp.ne.s32.totalorder %s52, %s55
      %p64 = scmp.eq.s32.totalorder %s21, 1
      %p65 = por %p63, %p64
      %p66 = scmp.ne.s32.totalorder %s55, %s56
      %p67 = scmp.eq.s32.totalorder %s21, 0
      %p68 = por %p66, %p67
      %p69 = scmp.ne.s32.totalorder %s55, %s56
      %p70 = scmp.eq.s32.totalorder %s22, 1
      %p71 = por %p69, %p70
      %p73 = scmp.ne.s32.totalorder %s56, %s72
      %p74 = scmp.eq.s32.totalorder %s22, 0
      %p75 = por %p73, %p74
      %s77 = sadd.s32 %s76, 1
      %p80 = scmp.eq.s32.totalorder %s16, 1
      %p81 = scmp.ne.s32.totalorder %s76, %s78
      %p82 = scmp.eq.s32.totalorder %s16, 0
      %p83 = por %p81, %p82
      %p84 = scmp.ne.s32.totalorder %s76, %s78
      %p85 = scmp.eq.s32.totalorder %s21, 1
      %p86 = por %p84, %p85
      %p87 = scmp.ne.s32.totalorder %s78, %s79
      %p88 = scmp.eq.s32.totalorder %s21, 0
      %p89 = por %p87, %p88
      %p90 = scmp.ne.s32.totalorder %s78, %s79
      %p91 = scmp.eq.s32.totalorder %s22, 1
      %p92 = por %p90, %p91
      %p94 = scmp.ne.s32.totalorder %s79, %s93
      %p95 = scmp.eq.s32.totalorder %s22, 0
      %p96 = por %p94, %p95
      %s98 = sadd.s32 %s97, 1
      %p101 = scmp.eq.s32.totalorder %s16, 1
      %p102 = scmp.ne.s32.totalorder %s97, %s99
      %p103 = scmp.eq.s32.totalorder %s16, 0
      %p104 = por %p102, %p103
      %p105 = scmp.ne.s32.totalorder %s97, %s99
      %p106 = scmp.eq.s32.totalorder %s21, 1
      %p107 = por %p105, %p106
      %p108 = scmp.ne.s32.totalorder %s99, %s100
      %p109 = scmp.eq.s32.totalorder %s21, 0
      %p110 = por %p108, %p109
      %p111 = scmp.ne.s32.totalorder %s99, %s100
      %p112 = scmp.eq.s32.totalorder %s22, 1
      %p113 = por %p111, %p112
      %p115 = scmp.ne.s32.totalorder %s100, %s114
      %p116 = scmp.eq.s32.totalorder %s22, 0
      %p117 = por %p115, %p116
      %s119 = sadd.s32 %s118, 1
      %p122 = scmp.eq.s32.totalorder %s16, 1
      %p123 = scmp.ne.s32.totalorder %s118, %s120
      %p124 = scmp.eq.s32.totalorder %s16, 0
      %p125 = por %p123, %p124
      %p126 = scmp.ne.s32.totalorder %s118, %s120
      %p127 = scmp.eq.s32.totalorder %s21, 1
      %p128 = por %p126, %p127
      %p129 = scmp.ne.s32.totalorder %s120, %s121
      %p130 = scmp.eq.s32.totalorder %s21, 0
      %p131 = por %p129, %p130
      %p132 = scmp.ne.s32.totalorder %s120, %s121
      %p133 = scmp.eq.s32.totalorder %s22, 1
      %p134 = por %p132, %p133
      %p136 = scmp.ne.s32.totalorder %s121, %s135
      %p137 = scmp.eq.s32.totalorder %s22, 0
      %p138 = por %p136, %p137
      %s140 = sadd.s32 %s139, 1
      %p143 = scmp.eq.s32.totalorder %s16, 1
      %p144 = scmp.ne.s32.totalorder %s139, %s141
      %p145 = scmp.eq.s32.totalorder %s16, 0
      %p146 = por %p144, %p145
      %p147 = scmp.ne.s32.totalorder %s139, %s141
      %p148 = scmp.eq.s32.totalorder %s21, 1
      %p149 = por %p147, %p148
      %p150 = scmp.ne.s32.totalorder %s141, %s142
      %p151 = scmp.eq.s32.totalorder %s21, 0
      %p152 = por %p150, %p151
      %p153 = scmp.ne.s32.totalorder %s141, %s142
      %p154 = scmp.eq.s32.totalorder %s22, 1
      %p155 = por %p153, %p154
      %p157 = scmp.ne.s32.totalorder %s142, %s156
      %p158 = scmp.eq.s32.totalorder %s22, 0
      %p159 = por %p157, %p158
      %s160 = ssub.s32 %s16, %s23
      %p161 = scmp.eq.s32.totalorder %s160, 0
      %s163 = sadd.s32 %s162, 1
      %s164 = scalar_select %p161, %s162, %s163
      %p167 = pneg %p161
      %p168 = scmp.eq.s32.totalorder %s16, 1
      %p169 = por %p167, %p168
      %p170 = scmp.ne.s32.totalorder %s162, %s165
      %p171 = scmp.eq.s32.totalorder %s16, 0
      %p172 = por %p170, %p171
      %p173 = scmp.ne.s32.totalorder %s162, %s165
      %p174 = scmp.eq.s32.totalorder %s21, 1
      %p175 = por %p173, %p174
      %p176 = scmp.ne.s32.totalorder %s165, %s166
      %p177 = scmp.eq.s32.totalorder %s21, 0
      %p178 = por %p176, %p177
      %p179 = scmp.ne.s32.totalorder %s165, %s166
      %p180 = scmp.eq.s32.totalorder %s22, 1
      %p181 = por %p179, %p180
      %p183 = scmp.ne.s32.totalorder %s166, %s182
      %p184 = scmp.eq.s32.totalorder %s22, 0
      %p185 = por %p183, %p184
      %p186 = scmp.le.s32.totalorder 1, %s16
      %p187 = scmp.lt.s32.totalorder %s16, 3
      %p188 = pnand %p186, %p187
      %p189 = pneg %p188
      // Predicated region
      $region9: #{tpu_custom_call.1} parent=5 // pred_check
        _
      $region10: #{tpu_custom_call.1} parent=5 // pred_check_branch
        %191 = sbr.rel (%p188) target = $region12
      $region11: #{tpu_custom_call.1} parent=5 // pred_region
        %s192 = ssub.s32 %s16, 1
        // Predicated region
        $region13: #{tpu_custom_call.1} parent=11 // pred_check
          %p193 = pneg %p89
        $region14: #{tpu_custom_call.1} parent=11 // pred_check_branch
          %195 = sbr.rel (%p193) target = $region16
        $region15: #{tpu_custom_call.1} parent=11 // pred_region
          %s197 = ssub.s32 768, 768
          %198 = vsyncadd [#allocation3], %s197
          %s199 = sshll.u32 [#allocation2], 4
          %s200 = int_to_ptr.vmem [resolvable:$true] %s199
          %205 = dma.hbm_to_vmem [thread:$0]  %s2, 768, %s200, [#allocation3], 64, 64, 4
        $region16: #{tpu_custom_call.1} parent=11 // pred_fallthru
          _
        // Predicated region
        $region17: #{tpu_custom_call.1} parent=11 // pred_check
          %p206 = pneg %p110
        $region18: #{tpu_custom_call.1} parent=11 // pred_check_branch
          %208 = sbr.rel (%p206) target = $region20
        $region19: #{tpu_custom_call.1} parent=11 // pred_region
          _
        $region20: #{tpu_custom_call.1} parent=11 // pred_fallthru
          _
        // Predicated region
        $region21: #{tpu_custom_call.1} parent=11 // pred_check
          %p209 = pneg %p131
        $region22: #{tpu_custom_call.1} parent=11 // pred_check_branch
          %211 = sbr.rel (%p209) target = $region24
        $region23: #{tpu_custom_call.1} parent=11 // pred_region
          _
        $region24: #{tpu_custom_call.1} parent=11 // pred_fallthru
          _
        // Predicated region
        $region25: #{tpu_custom_call.1} parent=11 // pred_check
          %p212 = pneg %p152
        $region26: #{tpu_custom_call.1} parent=11 // pred_check_branch
          %214 = sbr.rel (%p212) target = $region28
        $region27: #{tpu_custom_call.1} parent=11 // pred_region
          _
        $region28: #{tpu_custom_call.1} parent=11 // pred_fallthru
          _
      $region12: #{tpu_custom_call.1} parent=5 // pred_fallthru
        _
      %p215 = scmp.lt.s32.totalorder %s16, 2
      // Predicated region
      $region29: #{tpu_custom_call.1} parent=5 // pred_check
        %p216 = pneg %p215
      $region30: #{tpu_custom_call.1} parent=5 // pred_check_branch
        %218 = sbr.rel (%p216) target = $region32
      $region31: #{tpu_custom_call.1} parent=5 // pred_region
        // Predicated region
        $region33: #{tpu_custom_call.1} parent=31 // pred_check
          %p219 = pneg %p36
        $region34: #{tpu_custom_call.1} parent=31 // pred_check_branch
          %221 = sbr.rel (%p219) target = $region36
        $region35: #{tpu_custom_call.1} parent=31 // pred_region
          %p222 = scmp.lt.s32.totalorder %s16, 1
          %s223 = scalar_select %p222, %s16, 1
          %s224 = smul.addr %s223, 8
          %s225 = scalar_lea.vmem %s0, %s224
        $region36: #{tpu_custom_call.1} parent=31 // pred_fallthru
          _
        // Predicated region
        $region37: #{tpu_custom_call.1} parent=31 // pred_check
          %p226 = pneg %p62
        $region38: #{tpu_custom_call.1} parent=31 // pred_check_branch
          %228 = sbr.rel (%p226) target = $region40
        $region39: #{tpu_custom_call.1} parent=31 // pred_region
          %p229 = scmp.lt.s32.totalorder %s16, 1
          %s230 = scalar_select %p229, %s16, 1
          %s231 = smul.addr %s230, 8
          %s232 = scalar_lea.vmem %s1, %s231
        $region40: #{tpu_custom_call.1} parent=31 // pred_fallthru
          _
      $region32: #{tpu_custom_call.1} parent=5 // pred_fallthru
        _
      %p233 = scmp.le.s32.totalorder 1, %s16
      %p234 = scmp.lt.s32.totalorder %s16, 3
      %p235 = pnand %p233, %p234
      %p236 = pneg %p235
      // Predicated region
      $region41: #{tpu_custom_call.1} parent=5 // pred_check
        _
      $region42: #{tpu_custom_call.1} parent=5 // pred_check_branch
        %238 = sbr.rel (%p235) target = $region44
      $region43: #{tpu_custom_call.1} parent=5 // pred_region
        %s239 = ssub.s32 %s16, 1
        // Predicated region
        $region45: #{tpu_custom_call.1} parent=43 // pred_check
          %p240 = pneg %p89
        $region46: #{tpu_custom_call.1} parent=43 // pred_check_branch
          %242 = sbr.rel (%p240) target = $region48
        $region47: #{tpu_custom_call.1} parent=43 // pred_region
          %243 = dma.done [#allocation3], 768
        $region48: #{tpu_custom_call.1} parent=43 // pred_fallthru
          _
        %p244 = scmp.lt.s32.totalorder %s21, 1
        %s245 = scalar_select %p244, %s21, 1
        %s246 = smul.addr %s245, 8
        %s247 = scalar_lea.vmem %s0, %s246
        %p248 = pneg %p42
        %p249 = pneg %p39
        %p250 = scmp.lt.s32.totalorder %s21, 1
        %s251 = scalar_select %p250, %s21, 1
        %s252 = smul.addr %s251, 8
        %s253 = scalar_lea.vmem %s1, %s252
        %p254 = pneg %p68
        %p255 = pneg %p65
        %p256 = pneg %p89
        %p257 = pneg %p86
        %p258 = pneg %p110
        %p259 = pneg %p107
        %p260 = pneg %p131
        %p261 = pneg %p128
        %p262 = pneg %p152
        %p263 = pneg %p149
        %p264 = pneg %p178
        %p265 = pneg %p175
        %s266 = sand.u32 %s165, 1
        %s267 = scalar_lea.sflag [#allocation4], %s266
        %s268 = sand.u32 %s165, 1
        %s269 = smul.addr %s268, 8
        %s270 = scalar_lea.vmem [#allocation5], %s269
        %p271 = scmp.lt.s32.totalorder %s21, 1
        %s272 = scalar_select %p271, %s21, 1
        %s273 = smul.addr %s272, 8
        %s274 = scalar_lea.vmem %s0, %s273
        %p275 = scmp.lt.s32.totalorder %s21, 1
        %s276 = scalar_select %p275, %s21, 1
        %s277 = smul.addr %s276, 8
        %s278 = scalar_lea.vmem %s1, %s277
        %v280 = vld [vmem:[%s274] sm:$0xff]
        %v281 = vld [vmem:[%s278] sm:$0xff]
        %vm282 = vcmask 261120
        %v283 = vsel %vm282, %v280, 0.0
        %284 = vadd.xlane.f32.xlu0 %v283
        %v285 = vpop.xlane.xlu0 %284
        %v286 = vrcp.pop 32.0
        %v287 = vmul.f32 %v285, %v286
        %v288 = vsub.f32 %v280, %v287
        %v289 = vmul.f32 %v288, %v288
        %v290 = vsel %vm282, %v289, 0.0
        %291 = vadd.xlane.f32.xlu0 %v290
        %v292 = vpop.xlane.xlu0 %291
        %v293 = vmul.f32 %v292, %v286
        %v294 = vadd.f32 %v293, 1e-05
        %v295 = vrsqrt.pop %v294
        %v296 = vmul.f32 %v288, %v295
        %v297 = vld [vmem:[%s4] sm:$0x1]
        %v299 = vlaneseq
        %v300 = vshrl.u32 %v299, 7
        %v301 = vsub.s32 0, %v300
        %v302 = vrot.slane %v297, %v301
        %v304 = vmul.f32 %v296, %v302
        %v305 = vld [vmem:[%s5] sm:$0x1]
        %v307 = vlaneseq
        %v308 = vshrl.u32 %v307, 7
        %v309 = vsub.s32 0, %v308
        %v310 = vrot.slane %v305, %v309
        %v312 = vadd.f32 %v304, %v310
        %v313 = vpack.c.bf16 %v312, %v312
        %v314 = vld [vmem:[#allocation2] sm:$0xf]
        %v315 = vld [vmem:[#allocation2 + $0x4] sm:$0xf]
        %v316 = vld [vmem:[#allocation2 + $0x8] sm:$0xf]
        %v317 = vld [vmem:[#allocation2 + $0xc] sm:$0xf]
        %v318 = vld [vmem:[%s3] sm:$0x1]
        %v320 = vlaneseq
        %v321 = vshrl.u32 %v320, 7
        %v322 = vsub.s32 0, %v321
        %v323 = vrot.slane %v318, %v322
        %v329 = vunpack.c.l.b16 %v314
        %v330 = vunpack.c.l.b16 %v315
        %v331 = vunpack.c.l.b16 %v316
        %v332 = vunpack.c.l.b16 %v317
        %v333 = vpack.c.b16 %v330, %v329
        %v334 = vpack.c.b16 %v332, %v331
        %v338 = vsel %vm282, %v313, 0
        %340 = vmatprep.subr.bf16.mxu0 0
        %341 = vmatpush1.bf16.msra.mxu0 0
        %342 = vmatprep.subr.bf16.mxu0 0
        %343 = vmatpush1.bf16.msra.mxu0 0
        %344 = vmatprep.subr.bf16.mxu0 0
        %345 = vmatpush1.bf16.msra.mxu0 0
        %346 = vmatprep.subr.bf16.mxu0 0
        %347 = vmatpush1.bf16.msra.mxu0 0
        %348 = vmatprep.subr.bf16.mxu0 0
        %349 = vmatpush1.bf16.msra.mxu0 0
        %350 = vmatprep.subr.bf16.mxu0 0
        %351 = vmatpush1.bf16.msra.mxu0 0
        %352 = vmatprep.subr.bf16.mxu0 0
        %353 = vmatpush1.bf16.msra.mxu0 %v334
        %354 = vmatprep.subr.bf16.mxu0 0
        %355 = vmatpush1.bf16.msra.mxu0 %v333
        %356 = vmatprep.subr.bf16.mxu0 0
        %357 = vmatpush2.bf16.msra.mxu0 0
        %358 = vmatprep.subr.bf16.mxu0 0
        %359 = vmatpush2.bf16.msra.mxu0 0
        %360 = vmatprep.subr.bf16.mxu0 0
        %361 = vmatpush2.bf16.msra.mxu0 0
        %362 = vmatprep.subr.bf16.mxu0 0
        %363 = vmatpush2.bf16.msra.mxu0 0
        %364 = vmatprep.subr.bf16.mxu0 0
        %365 = vmatpush2.bf16.msra.mxu0 0
        %366 = vmatprep.subr.bf16.mxu0 0
        %367 = vmatpush2.bf16.msra.mxu0 0
        %368 = vmatprep.subr.bf16.mxu0 0
        %369 = vmatpush2.bf16.msra.mxu0 0
        %370 = vmatprep.subr.bf16.mxu0 0
        %371 = vmatpush2.bf16.msra.mxu0 0
        %372 = vmatprep.mubr.bf16.mxu0 0
        %373 = vmatmul.mubr.bf16.gmra.mxu0 %v338
        %v374 = vpop.f32.mrf.mxu0
        %v375 = vadd.f32 %v323, %v374
        %v376 = vpop.f32.mrf.mxu0
        %v377 = vpop.f32.mrf.mxu0
        %v378 = vpop.f32.mrf.mxu0
        %379 = vdwg.mxu0
        %s380 = scalar_lea.vmem [#allocation2], 16
        %v381 = vld [vmem:[%s380] sm:$0xf]
        %v382 = vld [vmem:[%s380 + $0x4] sm:$0xf]
        %v383 = vld [vmem:[%s380 + $0x8] sm:$0xf]
        %v384 = vld [vmem:[%s380 + $0xc] sm:$0xf]
        %s385 = scalar_lea.vmem %s3, 1
        %v386 = vld [vmem:[%s385] sm:$0x1]
        %v388 = vlaneseq
        %v389 = vshrl.u32 %v388, 7
        %v390 = vsub.s32 0, %v389
        %v391 = vrot.slane %v386, %v390
        %v397 = vunpack.c.l.b16 %v381
        %v398 = vunpack.c.l.b16 %v382
        %v399 = vunpack.c.l.b16 %v383
        %v400 = vunpack.c.l.b16 %v384
        %v401 = vpack.c.b16 %v398, %v397
        %v402 = vpack.c.b16 %v400, %v399
        %405 = vmatprep.subr.bf16.mxu0 0
        %406 = vmatpush1.bf16.msra.mxu0 0
        %407 = vmatprep.subr.bf16.mxu0 0
        %408 = vmatpush1.bf16.msra.mxu0 0
        %409 = vmatprep.subr.bf16.mxu0 0
        %410 = vmatpush1.bf16.msra.mxu0 0
        %411 = vmatprep.subr.bf16.mxu0 0
        %412 = vmatpush1.bf16.msra.mxu0 0
        %413 = vmatprep.subr.bf16.mxu0 0
        %414 = vmatpush1.bf16.msra.mxu0 0
        %415 = vmatprep.subr.bf16.mxu0 0
        %416 = vmatpush1.bf16.msra.mxu0 0
        %417 = vmatprep.subr.bf16.mxu0 0
        %418 = vmatpush1.bf16.msra.mxu0 %v402
        %419 = vmatprep.subr.bf16.mxu0 0
        %420 = vmatpush1.bf16.msra.mxu0 %v401
        %421 = vmatprep.subr.bf16.mxu0 0
        %422 = vmatpush2.bf16.msra.mxu0 0
        %423 = vmatprep.subr.bf16.mxu0 0
        %424 = vmatpush2.bf16.msra.mxu0 0
        %425 = vmatprep.subr.bf16.mxu0 0
        %426 = vmatpush2.bf16.msra.mxu0 0
        %427 = vmatprep.subr.bf16.mxu0 0
        %428 = vmatpush2.bf16.msra.mxu0 0
        %429 = vmatprep.subr.bf16.mxu0 0
        %430 = vmatpush2.bf16.msra.mxu0 0
        %431 = vmatprep.subr.bf16.mxu0 0
        %432 = vmatpush2.bf16.msra.mxu0 0
        %433 = vmatprep.subr.bf16.mxu0 0
        %434 = vmatpush2.bf16.msra.mxu0 0
        %435 = vmatprep.subr.bf16.mxu0 0
        %436 = vmatpush2.bf16.msra.mxu0 0
        %437 = vmatprep.mubr.bf16.mxu0 0
        %438 = vmatmul.mubr.bf16.gmra.mxu0 %v338
        %v439 = vpop.f32.mrf.mxu0
        %v440 = vadd.f32 %v391, %v439
        %v441 = vpop.f32.mrf.mxu0
        %v442 = vpop.f32.mrf.mxu0
        %v443 = vpop.f32.mrf.mxu0
        %444 = vdwg.mxu0
        %s445 = scalar_lea.vmem [#allocation2], 32
        %v446 = vld [vmem:[%s445] sm:$0xf]
        %v447 = vld [vmem:[%s445 + $0x4] sm:$0xf]
        %v448 = vld [vmem:[%s445 + $0x8] sm:$0xf]
        %v449 = vld [vmem:[%s445 + $0xc] sm:$0xf]
        %s450 = scalar_lea.vmem %s3, 2
        %v451 = vld [vmem:[%s450] sm:$0x1]
        %v453 = vlaneseq
        %v454 = vshrl.u32 %v453, 7
        %v455 = vsub.s32 0, %v454
        %v456 = vrot.slane %v451, %v455
        %v462 = vunpack.c.l.b16 %v446
        %v463 = vunpack.c.l.b16 %v447
        %v464 = vunpack.c.l.b16 %v448
        %v465 = vunpack.c.l.b16 %v449
        %v466 = vpack.c.b16 %v463, %v462
        %v467 = vpack.c.b16 %v465, %v464
        %470 = vmatprep.subr.bf16.mxu0 0
        %471 = vmatpush1.bf16.msra.mxu0 0
        %472 = vmatprep.subr.bf16.mxu0 0
        %473 = vmatpush1.bf16.msra.mxu0 0
        %474 = vmatprep.subr.bf16.mxu0 0
        %475 = vmatpush1.bf16.msra.mxu0 0
        %476 = vmatprep.subr.bf16.mxu0 0
        %477 = vmatpush1.bf16.msra.mxu0 0
        %478 = vmatprep.subr.bf16.mxu0 0
        %479 = vmatpush1.bf16.msra.mxu0 0
        %480 = vmatprep.subr.bf16.mxu0 0
        %481 = vmatpush1.bf16.msra.mxu0 0
        %482 = vmatprep.subr.bf16.mxu0 0
        %483 = vmatpush1.bf16.msra.mxu0 %v467
        %484 = vmatprep.subr.bf16.mxu0 0
        %485 = vmatpush1.bf16.msra.mxu0 %v466
        %486 = vmatprep.subr.bf16.mxu0 0
        %487 = vmatpush2.bf16.msra.mxu0 0
        %488 = vmatprep.subr.bf16.mxu0 0
        %489 = vmatpush2.bf16.msra.mxu0 0
        %490 = vmatprep.subr.bf16.mxu0 0
        %491 = vmatpush2.bf16.msra.mxu0 0
        %492 = vmatprep.subr.bf16.mxu0 0
        %493 = vmatpush2.bf16.msra.mxu0 0
        %494 = vmatprep.subr.bf16.mxu0 0
        %495 = vmatpush2.bf16.msra.mxu0 0
        %496 = vmatprep.subr.bf16.mxu0 0
        %497 = vmatpush2.bf16.msra.mxu0 0
        %498 = vmatprep.subr.bf16.mxu0 0
        %499 = vmatpush2.bf16.msra.mxu0 0
        %500 = vmatprep.subr.bf16.mxu0 0
        %501 = vmatpush2.bf16.msra.mxu0 0
        %502 = vmatprep.mubr.bf16.mxu0 0
        %503 = vmatmul.mubr.bf16.gmra.mxu0 %v338
        %v504 = vpop.f32.mrf.mxu0
        %v505 = vadd.f32 %v456, %v504
        %v506 = vpop.f32.mrf.mxu0
        %v507 = vpop.f32.mrf.mxu0
        %v508 = vpop.f32.mrf.mxu0
        %509 = vdwg.mxu0
        %v510 = vsub.f32 1.0, %v281
        %v511 = vmul.f32 %v510, -1000000.0
        %513 = vset.pattern.permute.xlu0 0
        %514 = vperm.xlu0 %513, %v511
        %v515 = vpop.permute.xlu0 %514
        %v517 = vadd.f32 %v440, %v515
        %519 = vset.pattern.permute.xlu0 0
        %520 = vperm.xlu0 %519, %v281
        %v521 = vpop.permute.xlu0 %520
        %v523 = vmul.f32 %v505, %v521
        %v524 = vlaneseq
        %v525 = vshrl.u32 %v524, 7
        %v526 = vadd.s32 %v525, 8
        %v527 = vadd.s32 %v525, 16
        %v528 = vadd.s32 %v525, 24
        %v529 = vcvt.s32.f32 %v525
        %v530 = vcvt.s32.f32 %v526
        %v531 = vcvt.s32.f32 %v527
        %v532 = vcvt.s32.f32 %v528
        %v533 = vlaneseq
        %v534 = vand.u32 %v533, 127
        %v535 = vcvt.s32.f32 %v534
        %v536 = vadd.f32 %v529, 0.5
        %v537 = vadd.f32 %v530, 0.5
        %v538 = vadd.f32 %v531, 0.5
        %v539 = vadd.f32 %v532, 0.5
        %v540 = vmul.f32 %v536, 0.125
        %v541 = vmul.f32 %v537, 0.125
        %v542 = vmul.f32 %v538, 0.125
        %v543 = vmul.f32 %v539, 0.125
        %v544 = vfloor.f32 %v540
        %v545 = vfloor.f32 %v541
        %v546 = vfloor.f32 %v542
        %v547 = vfloor.f32 %v543
        %v548 = vadd.f32 %v535, 0.5
        %v549 = vmul.f32 %v548, 0.125
        %v550 = vfloor.f32 %v549
        %vm551 = vcmp.eq.f32.partialorder %v544, %v550
        %vm552 = vcmp.eq.f32.partialorder %v545, %v550
        %vm553 = vcmp.eq.f32.partialorder %v546, %v550
        %vm554 = vcmp.eq.f32.partialorder %v547, %v550
        %v555 = vsel %vm551, 1, 0
        %v556 = vsel %vm552, 1, 0
        %v557 = vsel %vm553, 1, 0
        %v558 = vsel %vm554, 1, 0
        %v559 = vcvt.s32.f32 %v555
        %v560 = vcvt.s32.f32 %v556
        %v561 = vcvt.s32.f32 %v557
        %v562 = vcvt.s32.f32 %v558
        %v563 = vpack.c.bf16 %v560, %v559
        %v564 = vpack.c.bf16 %v562, %v561
        %v565 = vsel %vm282, %v375, -inf
        %566 = vmax.xlane.f32.xlu0 %v565
        %v567 = vpop.xlane.xlu0 %566
        %v568 = vsub.f32 %v375, %v567
        %v569 = vmul.f32 %v568, 1.442695
        %v570 = vpow.pop %v569
        %v571 = vpack.c.bf16 %v570, %v570
        %v573 = vsel %vm282, %v571, 0
        %575 = vmatprep.subr.bf16.mxu0 0
        %576 = vmatpush1.bf16.msra.mxu0 0
        %577 = vmatprep.subr.bf16.mxu0 0
        %578 = vmatpush1.bf16.msra.mxu0 0
        %579 = vmatprep.subr.bf16.mxu0 0
        %580 = vmatpush1.bf16.msra.mxu0 0
        %581 = vmatprep.subr.bf16.mxu0 0
        %582 = vmatpush1.bf16.msra.mxu0 0
        %583 = vmatprep.subr.bf16.mxu0 0
        %584 = vmatpush1.bf16.msra.mxu0 0
        %585 = vmatprep.subr.bf16.mxu0 0
        %586 = vmatpush1.bf16.msra.mxu0 0
        %587 = vmatprep.subr.bf16.mxu0 0
        %588 = vmatpush1.bf16.msra.mxu0 %v564
        %589 = vmatprep.subr.bf16.mxu0 0
        %590 = vmatpush1.bf16.msra.mxu0 %v563
        %591 = vmatprep.subr.bf16.mxu0 0
        %592 = vmatpush2.bf16.msra.mxu0 0
        %593 = vmatprep.subr.bf16.mxu0 0
        %594 = vmatpush2.bf16.msra.mxu0 0
        %595 = vmatprep.subr.bf16.mxu0 0
        %596 = vmatpush2.bf16.msra.mxu0 0
        %597 = vmatprep.subr.bf16.mxu0 0
        %598 = vmatpush2.bf16.msra.mxu0 0
        %599 = vmatprep.subr.bf16.mxu0 0
        %600 = vmatpush2.bf16.msra.mxu0 0
        %601 = vmatprep.subr.bf16.mxu0 0
        %602 = vmatpush2.bf16.msra.mxu0 0
        %603 = vmatprep.subr.bf16.mxu0 0
        %604 = vmatpush2.bf16.msra.mxu0 0
        %605 = vmatprep.subr.bf16.mxu0 0
        %606 = vmatpush2.bf16.msra.mxu0 0
        %607 = vmatprep.mubr.bf16.mxu0 0
        %608 = vmatmul.mubr.bf16.gmra.mxu0 %v573
        %v609 = vpop.f32.mrf.mxu0
        %v610 = vadd.f32 0.0, %v609
        %v611 = vpop.f32.mrf.mxu0
        %v612 = vpop.f32.mrf.mxu0
        %v613 = vpop.f32.mrf.mxu0
        %614 = vdwg.mxu0
        %v615 = vmax.f32 %v610, 1e-20
        %v616 = vrcp.pop %v615
        %v617 = vmul.f32 %v570, %v616
        %v618 = vsel %vm282, %v517, -inf
        %v619 = vrot.slane %v618, 4
        %v620 = vmax.f32 %v618, %v619
        %v621 = vrot.slane %v620, 2
        %v622 = vmax.f32 %v620, %v621
        %v623 = vrot.slane %v622, 1
        %v624 = vmax.f32 %v622, %v623
        %v625 = vsub.f32 %v517, %v624
        %v626 = vmul.f32 %v625, 1.442695
        %v627 = vpow.pop %v626
        %v628 = vsel %vm282, %v627, 0.0
        %v629 = vrot.slane %v628, 4
        %v630 = vadd.f32 %v628, %v629
        %v631 = vrot.slane %v630, 2
        %v632 = vadd.f32 %v630, %v631
        %v633 = vrot.slane %v632, 1
        %v634 = vadd.f32 %v632, %v633
        %v635 = vrcp.pop %v634
        %v636 = vmul.f32 %v627, %v635
        %v637 = vpack.c.bf16 %v617, %v617
        %v638 = vpack.c.bf16 %v636, %v636
        %v639 = vpack.c.bf16 %v523, %v523
        %640 = vxpose.xlu0.c.b16.start [1/8] %v638, 128
        %641 = vxpose.xlu0.c.b16.cont [2/8] 0, 128
        %642 = vxpose.xlu0.c.b16.cont [3/8] 0, 128
        %643 = vxpose.xlu0.c.b16.cont [4/8] 0, 128
        %644 = vxpose.xlu0.c.b16.cont [5/8] 0, 128
        %645 = vxpose.xlu0.c.b16.cont [6/8] 0, 128
        %646 = vxpose.xlu0.c.b16.cont [7/8] 0, 128
        %647 = vxpose.xlu0.c.b16.end [8/8] 0, 128
        %v648 = vpop.trf.xlu0
        %v649 = vpop.trf.xlu0
        %v650 = vpop.trf.xlu0
        %v651 = vpop.trf.xlu0
        %v652 = vpop.trf.xlu0
        %v653 = vpop.trf.xlu0
        %v654 = vpop.trf.xlu0
        %v655 = vpop.trf.xlu0
        %vm656 = vcmask 64512
        %v658 = vsel %vm656, %v648, 0
        %v661 = vsel %vm656, %v649, 0
        %vm663 = vcmask 1043456
        %v665 = vsel %vm663, %v639, 0
        %667 = vmatprep.subr.bf16.mxu0 0
        %668 = vmatpush1.bf16.msra.mxu0 0
        %669 = vmatprep.subr.bf16.mxu0 0
        %670 = vmatpush1.bf16.msra.mxu0 0
        %671 = vmatprep.subr.bf16.mxu0 0
        %672 = vmatpush1.bf16.msra.mxu0 0
        %673 = vmatprep.subr.bf16.mxu0 0
        %674 = vmatpush1.bf16.msra.mxu0 0
        %675 = vmatprep.subr.bf16.mxu0 0
        %676 = vmatpush1.bf16.msra.mxu0 0
        %677 = vmatprep.subr.bf16.mxu0 0
        %678 = vmatpush1.bf16.msra.mxu0 0
        %679 = vmatprep.subr.bf16.mxu0 0
        %680 = vmatpush1.bf16.msra.mxu0 0
        %681 = vmatprep.subr.bf16.mxu0 0
        %682 = vmatpush1.bf16.msra.mxu0 %v665
        %683 = vmatprep.subr.bf16.mxu0 0
        %684 = vmatpush2.bf16.msra.mxu0 0
        %685 = vmatprep.subr.bf16.mxu0 0
        %686 = vmatpush2.bf16.msra.mxu0 0
        %687 = vmatprep.subr.bf16.mxu0 0
        %688 = vmatpush2.bf16.msra.mxu0 0
        %689 = vmatprep.subr.bf16.mxu0 0
        %690 = vmatpush2.bf16.msra.mxu0 0
        %691 = vmatprep.subr.bf16.mxu0 0
        %692 = vmatpush2.bf16.msra.mxu0 0
        %693 = vmatprep.subr.bf16.mxu0 0
        %694 = vmatpush2.bf16.msra.mxu0 0
        %695 = vmatprep.subr.bf16.mxu0 0
        %696 = vmatpush2.bf16.msra.mxu0 0
        %697 = vmatprep.subr.bf16.mxu0 0
        %698 = vmatpush2.bf16.msra.mxu0 0
        %699 = vmatprep.mubr.bf16.mxu0 0
        %700 = vmatmul.mubr.bf16.gmra.mxu0 %v658
        %v701 = vpop.f32.mrf.mxu0
        %v702 = vadd.f32 0.0, %v701
        %v703 = vpop.f32.mrf.mxu0
        %v704 = vpop.f32.mrf.mxu0
        %v705 = vadd.f32 0.0, %v704
        %v706 = vpop.f32.mrf.mxu0
        %707 = vmatprep.mubr.bf16.mxu0 0
        %708 = vmatmul.mubr.bf16.gmra.mxu0 %v661
        %v709 = vpop.f32.mrf.mxu0
        %v710 = vadd.f32 0.0, %v709
        %v711 = vpop.f32.mrf.mxu0
        %v712 = vpop.f32.mrf.mxu0
        %v713 = vadd.f32 0.0, %v712
        %v714 = vpop.f32.mrf.mxu0
        %715 = vdwg.mxu0
        %v716 = vmul.f32 %v702, %v559
        %v717 = vmul.f32 %v705, %v560
        %v718 = vmul.f32 %v710, %v561
        %v719 = vmul.f32 %v713, %v562
        %v720 = vpack.c.bf16 %v717, %v716
        %v721 = vpack.c.bf16 %v719, %v718
        %v723 = vsel %vm282, %v637, 0
        %725 = vmatprep.subr.bf16.mxu0 0
        %726 = vmatpush1.bf16.msra.mxu0 0
        %727 = vmatprep.subr.bf16.mxu0 0
        %728 = vmatpush1.bf16.msra.mxu0 0
        %729 = vmatprep.subr.bf16.mxu0 0
        %730 = vmatpush1.bf16.msra.mxu0 0
        %731 = vmatprep.subr.bf16.mxu0 0
        %732 = vmatpush1.bf16.msra.mxu0 0
        %733 = vmatprep.subr.bf16.mxu0 0
        %734 = vmatpush1.bf16.msra.mxu0 0
        %735 = vmatprep.subr.bf16.mxu0 0
        %736 = vmatpush1.bf16.msra.mxu0 0
        %737 = vmatprep.subr.bf16.mxu0 0
        %738 = vmatpush1.bf16.msra.mxu0 %v721
        %739 = vmatprep.subr.bf16.mxu0 0
        %740 = vmatpush1.bf16.msra.mxu0 %v720
        %741 = vmatprep.subr.bf16.mxu0 0
        %742 = vmatpush2.bf16.msra.mxu0 0
        %743 = vmatprep.subr.bf16.mxu0 0
        %744 = vmatpush2.bf16.msra.mxu0 0
        %745 = vmatprep.subr.bf16.mxu0 0
        %746 = vmatpush2.bf16.msra.mxu0 0
        %747 = vmatprep.subr.bf16.mxu0 0
        %748 = vmatpush2.bf16.msra.mxu0 0
        %749 = vmatprep.subr.bf16.mxu0 0
        %750 = vmatpush2.bf16.msra.mxu0 0
        %751 = vmatprep.subr.bf16.mxu0 0
        %752 = vmatpush2.bf16.msra.mxu0 0
        %753 = vmatprep.subr.bf16.mxu0 0
        %754 = vmatpush2.bf16.msra.mxu0 0
        %755 = vmatprep.subr.bf16.mxu0 0
        %756 = vmatpush2.bf16.msra.mxu0 0
        %757 = vmatprep.mubr.bf16.mxu0 0
        %758 = vmatmul.mubr.bf16.gmra.mxu0 %v723
        %v759 = vpop.f32.mrf.mxu0
        %v760 = vadd.f32 0.0, %v759
        %v761 = vpop.f32.mrf.mxu0
        %v762 = vpop.f32.mrf.mxu0
        %v763 = vpop.f32.mrf.mxu0
        %764 = vdwg.mxu0
        %v765 = vadd.f32 %v280, %v760
        %766 = vst.msk [vmem:[%s270] sm:$0xff] %vm282, %v765
        %s767 = sand.u32 %s165, 1
        %s768 = scalar_lea.sflag [#allocation4], %s767
        %s769 = sand.u32 %s165, 1
        %s770 = smul.addr %s769, 8
        %s771 = scalar_lea.vmem [#allocation5], %s770
        // Predicated region
        $region49: #{tpu_custom_call.1} parent=43 // pred_check
          %p772 = pneg %p175
        $region50: #{tpu_custom_call.1} parent=43 // pred_check_branch
          %774 = sbr.rel (%p772) target = $region52
        $region51: #{tpu_custom_call.1} parent=43 // pred_region
          %s776 = ssub.s32 128, 128
          %777 = vsyncadd %s768, %s776
          %s778 = smul.addr %s21, 128
          %s779 = scalar_lea.hbm %s6, %s778
          %s781 = sshll.u32 %s771, 4
          %s782 = int_to_ptr.vmem [resolvable:$true] %s781
          %784 = dma.vmem_to_hbm [thread:$0]  %s782, 128, %s779, %s768
        $region52: #{tpu_custom_call.1} parent=43 // pred_fallthru
          _
      $region44: #{tpu_custom_call.1} parent=5 // pred_fallthru
        _
      %p785 = scmp.le.s32.totalorder 2, %s16
      // Predicated region
      $region53: #{tpu_custom_call.1} parent=5 // pred_check
        %p786 = pneg %p785
      $region54: #{tpu_custom_call.1} parent=5 // pred_check_branch
        %788 = sbr.rel (%p786) target = $region56
      $region55: #{tpu_custom_call.1} parent=5 // pred_region
        %s789 = ssub.s32 %s16, 2
        // Predicated region
        $region57: #{tpu_custom_call.1} parent=55 // pred_check
          %p790 = pneg %p181
        $region58: #{tpu_custom_call.1} parent=55 // pred_check_branch
          %792 = sbr.rel (%p790) target = $region60
        $region59: #{tpu_custom_call.1} parent=55 // pred_region
          %s793 = sand.u32 %s166, 1
          %s794 = scalar_lea.sflag [#allocation4], %s793
          %s795 = sand.u32 %s166, 1
          %s796 = smul.addr %s795, 8
          %s797 = scalar_lea.vmem [#allocation5], %s796
          %798 = dma.done %s794, 128
        $region60: #{tpu_custom_call.1} parent=55 // pred_fallthru
          _
      $region56: #{tpu_custom_call.1} parent=5 // pred_fallthru
        _
    $region6: #{tpu_custom_call.1} parent=1 // loop_footer
      %s20 = sadd.s32 1, %s16
    $region7: #{tpu_custom_call.1} parent=1 // loop_footer_branch
      %15 = sbr.rel target = $region3
    $region8: #{tpu_custom_call.1} parent=1 // loop_exit
      _
    %799 = vsyncpa [#allocation3], 1
    %s800 = scalar_lea.sflag [#allocation3], 1
    %801 = vsyncpa %s800, 1
    %802 = vsyncpa [#allocation4], 1
    %s803 = scalar_lea.sflag [#allocation4], 1
    %804 = vsyncpa %s803, 1

</llo_original>
